<compile_context>
chip_gen: v5e
topology: v5e:2x2
jax: 0.10.0
libtpu: 0.0.40
codegen_flags: <defaults>
</compile_context>

<pallas_src>
import functools
import math

import jax
import jax.numpy as jnp
from jax.experimental import pallas as pl
from jax.experimental.pallas import tpu as pltpu

_SUBLANES = 8
_LANE_CHOICES = (4096, 2048, 1024, 512, 256, 128)
# ~2 MiB per array per grid step: >=85% of HBM roofline on v6e per measured
# tile sweeps, while worst case (3 inputs + 1 output, double buffered, plus
# f32 accumulators) stays ~16-20 MiB, inside v5e/v6e/v7x VMEM budgets.
_TARGET_BLOCK_BYTES = 2 * 1024 * 1024
_VMEM_LIMIT_BYTES = 48 * 1024 * 1024


def _choose_layout(n, itemsize):
    """Pick (lanes, rows, block_rows, padded_n) for a flat length-n array."""
    for lanes in _LANE_CHOICES:
        if n % (_SUBLANES * lanes) == 0:
            padded = n
            break
    else:
        lanes = 1024
        chunk = _SUBLANES * lanes
        padded = ((n + chunk - 1) // chunk) * chunk
    rows = padded // lanes                      # always a multiple of 8
    target_rows = max(
        _SUBLANES,
        (_TARGET_BLOCK_BYTES // (lanes * itemsize)) // _SUBLANES * _SUBLANES)
    block_rows = min(target_rows, rows)         # multiple of 8 (or == rows)
    return lanes, rows, block_rows, padded


def _berhu_elem(gt, pred, threshold, w=None):
    l1 = jnp.abs(gt - pred)
    if w is not None:
        l1 = l1 * w
    t = jnp.float32(threshold)
    return jnp.where(l1 <= t, l1, (l1 * l1 + t * t) / (2.0 * t))


def _fold_to_tile(acc_ref):
    """Reduce a (block_rows, lanes) f32 accumulator to one (8, 128) tile using
    only static slices + VALU adds (runs once per split)."""
    br, lanes = acc_ref.shape
    a = acc_ref[0:8, :]
    for r in range(8, br, 8):
        a = a + acc_ref[r:r + 8, :]
    t = a[:, 0:128]
    for c in range(128, lanes, 128):
        t = t + a[:, c:c + 128]
    return t


# --------------------------- reduction='none' -------------------------------

def _berhu_none_kernel(gt_ref, pred_ref, out_ref, *, threshold):
    gt = gt_ref[...].astype(jnp.float32)
    pred = pred_ref[...].astype(jnp.float32)
    out_ref[...] = _berhu_elem(gt, pred, threshold).astype(out_ref.dtype)


def _berhu_none_w_kernel(gt_ref, pred_ref, w_ref, out_ref, *, threshold):
    gt = gt_ref[...].astype(jnp.float32)
    pred = pred_ref[...].astype(jnp.float32)
    w = w_ref[...].astype(jnp.float32)
    out_ref[...] = _berhu_elem(gt, pred, threshold, w).astype(out_ref.dtype)


# --------------------------- reduction='mean' -------------------------------

def _berhu_mean_kernel(gt_ref, pred_ref, out_ref, acc_ref, *,
                       threshold, valid_rows, block_rows, blocks_per_split,
                       needs_mask):
    s = pl.program_id(0)
    k = pl.program_id(1)

    @pl.when(k == 0)
    def _init():
        acc_ref[...] = jnp.zeros_like(acc_ref)

    gt = gt_ref[...].astype(jnp.float32)
    pred = pred_ref[...].astype(jnp.float32)
    b = _berhu_elem(gt, pred, threshold)
    if needs_mask:
        blk = s * blocks_per_split + k          # unclamped logical block index
        row = jax.lax.broadcasted_iota(jnp.int32, b.shape, 0) + blk * block_rows
        b = jnp.where(row < valid_rows, b, 0.0)
    acc_ref[...] += b                           # pure VALU add per step

    @pl.when(k == pl.num_programs(1) - 1)
    def _fin():
        out_ref[...] = _fold_to_tile(acc_ref)


def _berhu_wmean_kernel(gt_ref, pred_ref, w_ref, num_ref, den_ref,
                        acc_num_ref, acc_den_ref, *,
                        threshold, valid_rows, block_rows, blocks_per_split,
                        needs_mask):
    s = pl.program_id(0)
    k = pl.program_id(1)

    @pl.when(k == 0)
    def _init():
        acc_num_ref[...] = jnp.zeros_like(acc_num_ref)
        acc_den_ref[...] = jnp.zeros_like(acc_den_ref)

    gt = gt_ref[...].astype(jnp.float32)
    pred = pred_ref[...].astype(jnp.float32)
    w = w_ref[...].astype(jnp.float32)
    # Faithful to the reference: weights are applied inside L1 AND again in the
    # numerator sum (likely an upstream quirk, reproduced intentionally).
    b = _berhu_elem(gt, pred, threshold, w)
    bw = b * w
    if needs_mask:
        blk = s * blocks_per_split + k
        row = jax.lax.broadcasted_iota(jnp.int32, bw.shape, 0) + blk * block_rows
        valid = row < valid_rows
        bw = jnp.where(valid, bw, 0.0)
        w = jnp.where(valid, w, 0.0)
    acc_num_ref[...] += bw
    acc_den_ref[...] += w

    @pl.when(k == pl.num_programs(1) - 1)
    def _fin():
        num_ref[...] = _fold_to_tile(acc_num_ref)
        den_ref[...] = _fold_to_tile(acc_den_ref)


# ------------------------------ wrapper --------------------------------------

class BerhuPallas:
    """Pallas TPU port of torch Berhu(threshold, adaptive, reduction)."""

    def __init__(self, threshold: float, adaptive: bool = False,
                 reduction: str = 'none'):
        if adaptive:
            # TODO(synk): the adaptive branch in the reference uses an undefined
            # variable `error` (dead/broken code path); not reproducible.
            raise NotImplementedError(
                "adaptive threshold branch is broken in the reference")
        self.threshold = float(threshold)
        self.reduction = reduction

    def __call__(self, gt, pred, weights=None):
        orig_shape = gt.shape
        orig_dtype = gt.dtype
        n = int(math.prod(orig_shape))
        itemsize = jnp.dtype(orig_dtype).itemsize
        lanes, rows, block_rows, padded = _choose_layout(n, itemsize)
        nblocks = -(-rows // block_rows)

        def as_slab(x):
            flat = x.reshape(-1)
            if padded != n:                      # only pad when unaligned
                flat = jnp.pad(flat, (0, padded - n))
            return flat.reshape(rows, lanes)

        gt2 = as_slab(gt)
        pred2 = as_slab(pred)
        w2 = as_slab(weights) if weights is not None else None

        if self.reduction == 'mean':
            return self._mean(gt2, pred2, w2, n, rows, block_rows, nblocks,
                              lanes, orig_dtype)

        out2 = self._none(gt2, pred2, w2, rows, block_rows, nblocks, lanes,
                          orig_dtype)
        if padded == n:
            return out2.reshape(orig_shape)
        return out2.reshape(-1)[:n].reshape(orig_shape)

    # -- reduction='none' ------------------------------------------------------
    def _none(self, gt2, pred2, w2, rows, block_rows, nblocks, lanes, out_dtype):
        tile = pl.BlockSpec((block_rows, lanes), lambda i: (i, 0))
        if w2 is None:
            kern = functools.partial(_berhu_none_kernel, threshold=self.threshold)
            operands = (gt2, pred2)
        else:
            kern = functools.partial(_berhu_none_w_kernel, threshold=self.threshold)
            operands = (gt2, pred2, w2)

        in_bytes = sum(int(o.size) * o.dtype.itemsize for o in operands)
        out_bytes = rows * lanes * jnp.dtype(out_dtype).itemsize
        return pl.pallas_call(
            kern,
            out_shape=jax.ShapeDtypeStruct((rows, lanes), out_dtype),
            grid=(nblocks,),
            in_specs=[tile] * len(operands),
            out_specs=tile,
            compiler_params=pltpu.CompilerParams(
                dimension_semantics=("parallel",),
                vmem_limit_bytes=_VMEM_LIMIT_BYTES),
            cost_estimate=pl.CostEstimate(flops=6 * rows * lanes,
                                          transcendentals=0,
                                          bytes_accessed=in_bytes + out_bytes),
        )(*operands)

    # -- reduction='mean' ------------------------------------------------------
    def _mean(self, gt2, pred2, w2, n, rows, block_rows, nblocks, lanes,
              out_dtype):
        nsplit = 2 if nblocks >= 2 else 1        # 2-way split -> both TCs on v7x
        bps = -(-nblocks // nsplit)              # blocks per split
        needs_mask = (nsplit * bps * block_rows) != rows

        def in_map(s, k):
            # Clamp so the DMA window stays in bounds for the (at most one)
            # duplicated step when nblocks is odd; the in-kernel row mask
            # (computed from the UNclamped index) zeroes its contribution.
            return (jnp.minimum(s * bps + k, nblocks - 1), 0)

        tile = pl.BlockSpec((block_rows, lanes), in_map)
        out_spec = pl.BlockSpec((8, 128), lambda s, k: (s, 0))
        out_struct = jax.ShapeDtypeStruct((nsplit * 8, 128), jnp.float32)
        params = pltpu.CompilerParams(
            dimension_semantics=("parallel", "arbitrary"),
            vmem_limit_bytes=_VMEM_LIMIT_BYTES)
        common = dict(threshold=self.threshold, valid_rows=rows,
                      block_rows=block_rows, blocks_per_split=bps,
                      needs_mask=needs_mask)
        grid = (nsplit, bps)

        if w2 is None:
            in_bytes = 2 * rows * lanes * gt2.dtype.itemsize
            partials = pl.pallas_call(
                functools.partial(_berhu_mean_kernel, **common),
                out_shape=out_struct,
                grid=grid,
                in_specs=[tile, tile],
                out_specs=out_spec,
                scratch_shapes=[pltpu.VMEM((block_rows, lanes), jnp.float32)],
                compiler_params=params,
                cost_estimate=pl.CostEstimate(flops=7 * rows * lanes,
                                              transcendentals=0,
                                              bytes_accessed=in_bytes),
            )(gt2, pred2)
            return (jnp.sum(partials) / jnp.float32(n)).astype(out_dtype)

        in_bytes = 3 * rows * lanes * gt2.dtype.itemsize
        num_parts, den_parts = pl.pallas_call(
            functools.partial(_berhu_wmean_kernel, **common),
            out_shape=(out_struct, out_struct),
            grid=grid,
            in_specs=[tile, tile, tile],
            out_specs=[out_spec, out_spec],
            scratch_shapes=[pltpu.VMEM((block_rows, lanes), jnp.float32),
                            pltpu.VMEM((block_rows, lanes), jnp.float32)],
            compiler_params=params,
            cost_estimate=pl.CostEstimate(flops=10 * rows * lanes,
                                          transcendentals=0,
                                          bytes_accessed=in_bytes),
        )(gt2, pred2, w2)
        return (jnp.sum(num_parts) /
                (jnp.sum(den_parts) + jnp.float32(0.001))).astype(out_dtype)


# ------------------------------ reference & test ------------------------------

def _berhu_ref(gt, pred, threshold, weights=None, reduction='none'):
    l1 = jnp.abs(gt - pred)
    if weights is not None:
        l1 = l1 * weights
    b = jnp.where(l1 <= threshold, l1,
                  (l1 ** 2 + threshold ** 2) / (2.0 * threshold))
    if reduction == 'mean':
        if weights is None:
            return b.mean()
        return (b * weights).sum() / (weights.sum() + 0.001)
    return b


def _check(shape, threshold, key):
    k_gt, k_pred, k_w = jax.random.split(key, 3)
    gt = 0.5 * jax.random.normal(k_gt, shape, dtype=jnp.float32)
    pred = 0.5 * jax.random.normal(k_pred, shape, dtype=jnp.float32)
    weights = jax.random.uniform(k_w, shape, dtype=jnp.float32)

    none_mod = BerhuPallas(threshold, adaptive=False, reduction='none')
    mean_mod = BerhuPallas(threshold, adaptive=False, reduction='mean')

    out = jax.block_until_ready(none_mod(gt, pred))
    assert out.shape == shape and out.dtype == gt.dtype
    assert jnp.allclose(out, _berhu_ref(gt, pred, threshold), atol=1e-6)

    out_w = jax.block_until_ready(none_mod(gt, pred, weights))
    assert jnp.allclose(out_w, _berhu_ref(gt, pred, threshold, weights),
                        atol=1e-6)

    m = jax.block_until_ready(mean_mod(gt, pred))
    assert jnp.allclose(m, _berhu_ref(gt, pred, threshold, reduction='mean'),
                        rtol=1e-4, atol=1e-6)

    mw = jax.block_until_ready(mean_mod(gt, pred, weights))
    assert jnp.allclose(mw, _berhu_ref(gt, pred, threshold, weights,
                                       reduction='mean'),
                        rtol=1e-4, atol=1e-6)


if __name__ == "__main__":
    key = jax.random.PRNGKey(0)
    k1, k2, k3 = jax.random.split(key, 3)
    _check((2, 4, 16, 16), 0.2, k1)     # small NCHW, single block
    _check((2, 3, 17, 19), 0.2, k2)     # unaligned size -> zero-pad fallback
    _check((3, 8, 256, 256), 0.2, k3)   # multi-block, 2-way split, ragged mask
    print("KERNEL_OK")
</pallas_src>

<mosaic_0001>
module attributes {stable_mosaic.version = 11 : i64} {
  func.func @_berhu_none_kernel(%arg0: i32, %arg1: memref<8x256xf32, #tpu.memory_space<vmem>>, %arg2: memref<8x256xf32, #tpu.memory_space<vmem>>, %arg3: memref<8x256xf32, #tpu.memory_space<vmem>>) attributes {dimension_semantics = [#tpu.dimension_semantics<parallel>], iteration_bounds = array<i64: 1>, scalar_prefetch = 0 : i64, scratch_operands = 0 : i64, tpu.core_type = #tpu.core_type<tc>, window_params = [{transform_indices = @transform_0, window_bounds = array<i64: 8, 256>}, {transform_indices = @transform_1, window_bounds = array<i64: 8, 256>}, {transform_indices = @transform_2, window_bounds = array<i64: 8, 256>}]} {
    %c0 = arith.constant 0 : index
    %c0_0 = arith.constant 0 : index
    %0 = vector.load %arg1[%c0, %c0_0] : memref<8x256xf32, #tpu.memory_space<vmem>>, vector<8x256xf32>
    %c0_1 = arith.constant 0 : index
    %c0_2 = arith.constant 0 : index
    %1 = vector.load %arg2[%c0_1, %c0_2] : memref<8x256xf32, #tpu.memory_space<vmem>>, vector<8x256xf32>
    %2 = arith.subf %0, %1 : vector<8x256xf32>
    %3 = math.absf %2 : vector<8x256xf32>
    %cst = arith.constant 2.000000e-01 : f32
    %4 = vector.broadcast %cst : f32 to vector<8x256xf32>
    %5 = arith.cmpf ole, %3, %4 : vector<8x256xf32>
    %6 = arith.mulf %3, %3 : vector<8x256xf32>
    %cst_3 = arith.constant 2.000000e-01 : f32
    %cst_4 = arith.constant 2.000000e-01 : f32
    %7 = arith.mulf %cst_3, %cst_4 : f32
    %8 = vector.broadcast %7 : f32 to vector<8x256xf32>
    %9 = arith.addf %6, %8 : vector<8x256xf32>
    %cst_5 = arith.constant 2.000000e+00 : f32
    %cst_6 = arith.constant 2.000000e-01 : f32
    %10 = arith.mulf %cst_5, %cst_6 : f32
    %11 = vector.broadcast %10 : f32 to vector<8x256xf32>
    %12 = arith.divf %9, %11 : vector<8x256xf32>
    %13 = arith.select %5, %3, %12 : vector<8x256xi1>, vector<8x256xf32>
    %c0_7 = arith.constant 0 : index
    %c0_8 = arith.constant 0 : index
    %14 = vector.load %arg3[%c0_7, %c0_8] : memref<8x256xf32, #tpu.memory_space<vmem>>, vector<8x256xf32>
    tpu.vector_store %arg3[%c0_7, %c0_8], %13 {strides = array<i32>} : memref<8x256xf32, #tpu.memory_space<vmem>>, vector<8x256xf32>,
    return
  }
  func.func @transform_0(%arg0: i32) -> (i32, i32) {
    %c0_i32 = arith.constant 0 : i32
    %c0_i32_0 = arith.constant 0 : i32
    return %arg0, %c0_i32 : i32, i32
  }
  func.func @transform_1(%arg0: i32) -> (i32, i32) {
    %c0_i32 = arith.constant 0 : i32
    %c0_i32_0 = arith.constant 0 : i32
    return %arg0, %c0_i32 : i32, i32
  }
  func.func @transform_2(%arg0: i32) -> (i32, i32) {
    %c0_i32 = arith.constant 0 : i32
    %c0_i32_0 = arith.constant 0 : i32
    return %arg0, %c0_i32 : i32, i32
  }
}

</mosaic_0001>

<llo_original>
// kernel: tpu_custom_call.1
$region0: #{tpu_custom_call.1}
  #allocation0 [shape = 'u32[]', space=smem, size = 0x4, offset = 0x4, fixed_abs, tag = 'smem constant byte address 0x4 - core index']
  #allocation1 [shape = 'u32[72,128]{1,0:T(1,128)}', space=vmem, size = 0x9000, scoped, tag = 'internal scratch']
  %s0 = inlined_call_operand.hbm [shape: f32[8,256], index: 0, kind: input, shape index: {}]
  %s1 = inlined_call_operand.hbm [shape: f32[8,256], index: 1, kind: input, shape index: {}]
  %s2 = inlined_call_operand.hbm [shape: f32[8,256], index: 2, kind: output, shape index: {}]
  %s3 = sld [smem:[#allocation0]]
  $region26: #{tpu_custom_call.1} parent=0
    _
  %s5 = ssub.s32 1, %s3
  %s6 = scalar_select 0, %s5, %s3
  $region1: #{tpu_custom_call.1} parent=0
    #allocation2 [shape = 'u8[8192]{0}', space=vmem, size = 0x2000, scoped, tag = 'input window, operand 0, single buffered']
    #allocation3 [shape = 's32[1]{0}', space=sflag, size = 0x4, scoped, tag = 'scoped memory for tpu_custom_call.1']
    #allocation4 [shape = 's32[1]{0}', space=sflag, size = 0x4, scoped, tag = 'scoped memory for tpu_custom_call.1']
    #allocation5 [shape = 'u8[8192]{0}', space=vmem, size = 0x2000, scoped, tag = 'input window, operand 1, single buffered']
    #allocation6 [shape = 's32[1]{0}', space=sflag, size = 0x4, scoped, tag = 'scoped memory for tpu_custom_call.1']
    #allocation7 [shape = 'u8[8192]{0}', space=vmem, size = 0x2000, scoped, tag = 'output window, operand 0, single buffered']
    %7 = vsyncpa [#allocation3], 0
    %8 = vsyncpa [#allocation6], 0
    %9 = vsyncpa [#allocation4], 0
    // Predicated region
    $region2: #{tpu_custom_call.1} parent=1 // pred_check
      _
    $region3: #{tpu_custom_call.1} parent=1 // pred_check_branch
      %11 = sbr.rel (0) target = $region5
    $region4: #{tpu_custom_call.1} parent=1 // pred_region
      %13 = vsyncadd [#allocation3], 0
      %s15 = sshll.u32 %s0, 4
      %s16 = int_to_ptr.hbm [resolvable:$true] %s15
      %s17 = sshll.u32 [#allocation2], 4
      %s18 = int_to_ptr.vmem [resolvable:$true] %s17
      %20 = dma.hbm_to_vmem [thread:$0]  %s16, 256, %s18, [#allocation3]
    $region5: #{tpu_custom_call.1} parent=1 // pred_fallthru
      _
    // Predicated region
    $region6: #{tpu_custom_call.1} parent=1 // pred_check
      _
    $region7: #{tpu_custom_call.1} parent=1 // pred_check_branch
      %22 = sbr.rel (0) target = $region9
    $region8: #{tpu_custom_call.1} parent=1 // pred_region
      %24 = vsyncadd [#allocation6], 0
      %s26 = sshll.u32 %s1, 4
      %s27 = int_to_ptr.hbm [resolvable:$true] %s26
      %s28 = sshll.u32 [#allocation5], 4
      %s29 = int_to_ptr.vmem [resolvable:$true] %s28
      %31 = dma.hbm_to_vmem [thread:$0]  %s27, 256, %s29, [#allocation6]
    $region9: #{tpu_custom_call.1} parent=1 // pred_fallthru
      _
    // Predicated region
    $region10: #{tpu_custom_call.1} parent=1 // pred_check
      _
    $region11: #{tpu_custom_call.1} parent=1 // pred_check_branch
      %33 = sbr.rel (0) target = $region13
    $region12: #{tpu_custom_call.1} parent=1 // pred_region
      %35 = dma.done [#allocation3], 256
    $region13: #{tpu_custom_call.1} parent=1 // pred_fallthru
      _
    // Predicated region
    $region14: #{tpu_custom_call.1} parent=1 // pred_check
      _
    $region15: #{tpu_custom_call.1} parent=1 // pred_check_branch
      %37 = sbr.rel (0) target = $region17
    $region16: #{tpu_custom_call.1} parent=1 // pred_region
      %39 = dma.done [#allocation6], 256
    $region17: #{tpu_custom_call.1} parent=1 // pred_fallthru
      _
    %v40 = vld [vmem:[#allocation2] sm:$0xff]
    %v41 = vld [vmem:[#allocation2 + $0x8] sm:$0xff]
    %v42 = vld [vmem:[#allocation5] sm:$0xff]
    %v43 = vld [vmem:[#allocation5 + $0x8] sm:$0xff]
    %v44 = vsub.f32 %v40, %v42
    %v45 = vsub.f32 %v41, %v43
    %v46 = vand.u32 2147483647, %v44
    %v47 = vand.u32 2147483647, %v45
    %vm48 = vcmp.le.f32.partialorder %v46, 0.2
    %vm49 = vcmp.le.f32.partialorder %v47, 0.2
    %v50 = vmul.f32 %v46, %v46
    %v51 = vmul.f32 %v47, %v47
    %v52 = vadd.f32 %v50, 0.040000003
    %v53 = vadd.f32 %v51, 0.040000003
    %v54 = vrcp.pop 0.4
    %v55 = vmul.f32 0.4, %v54
    %v56 = vsub.f32 1.0, %v55
    %v57 = vmul.f32 %v54, %v56
    %v58 = vadd.f32 %v54, %v57
    %vm59 = vweird.f32 %v54
    %v60 = vsel %vm59, %v54, %v58
    %v61 = vmul.f32 %v52, %v60
    %v62 = vmul.f32 %v53, %v60
    %v63 = vsel %vm48, %v46, %v61
    %v64 = vsel %vm49, %v47, %v62
    %65 = vst [vmem:[#allocation7] sm:$0xff] %v63
    %66 = vst [vmem:[#allocation7 + $0x8] sm:$0xff] %v64
    // Predicated region
    $region18: #{tpu_custom_call.1} parent=1 // pred_check
      _
    $region19: #{tpu_custom_call.1} parent=1 // pred_check_branch
      %68 = sbr.rel (0) target = $region21
    $region20: #{tpu_custom_call.1} parent=1 // pred_region
      %70 = vsyncadd [#allocation4], 0
      %s72 = sshll.u32 [#allocation7], 4
      %s73 = int_to_ptr.vmem [resolvable:$true] %s72
      %s74 = sshll.u32 %s2, 4
      %s75 = int_to_ptr.hbm [resolvable:$true] %s74
      %77 = dma.vmem_to_hbm [thread:$0]  %s73, 256, %s75, [#allocation4]
    $region21: #{tpu_custom_call.1} parent=1 // pred_fallthru
      _
    // Predicated region
    $region22: #{tpu_custom_call.1} parent=1 // pred_check
      _
    $region23: #{tpu_custom_call.1} parent=1 // pred_check_branch
      %79 = sbr.rel (0) target = $region25
    $region24: #{tpu_custom_call.1} parent=1 // pred_region
      %81 = dma.done [#allocation4], 256
    $region25: #{tpu_custom_call.1} parent=1 // pred_fallthru
      _
    %82 = vsyncpa [#allocation3], 1
    %83 = vsyncpa [#allocation6], 1
    %84 = vsyncpa [#allocation4], 1

</llo_original>
